<compile_context>
chip_gen: v6e
topology: v6e:2x2x1
jax: 0.10.0
libtpu: 0.0.40
codegen_flags: <defaults>
</compile_context>

<pallas_src>
import functools

import jax
import jax.numpy as jnp
from jax.experimental import pallas as pl
from jax.experimental.pallas import tpu as pltpu


def _round_up(x, m):
    return ((x + m - 1) // m) * m


def _gap_kernel(x_ref, o_ref, acc_ref, *, inv_hw, num_k, rem, hw_chunk):
    # x_ref:   (ROW_TILE, HW_CHUNK) input block in VMEM
    # o_ref:   (ROW_TILE, 1) output block (resident across the hw-chunk axis)
    # acc_ref: (ROW_TILE, 1) f32 accumulator scratch
    k = pl.program_id(1)

    @pl.when(k == 0)
    def _():
        acc_ref[...] = jnp.zeros_like(acc_ref)

    if rem == hw_chunk:
        # Every chunk is fully in-bounds along H*W: plain accumulation.
        acc_ref[...] += jnp.sum(x_ref[...], axis=-1, keepdims=True, dtype=jnp.float32)
    else:
        # H*W does not divide evenly: mask the overhanging lanes, but only on the last chunk
        # (pl.when keeps the masking off the hot path of all earlier chunks).
        @pl.when(k < num_k - 1)
        def _():
            acc_ref[...] += jnp.sum(x_ref[...], axis=-1, keepdims=True, dtype=jnp.float32)

        @pl.when(k == num_k - 1)
        def _():
            col = jax.lax.broadcasted_iota(jnp.int32, x_ref.shape, 1)
            x_tail = jnp.where(col < rem, x_ref[...], 0)
            acc_ref[...] += jnp.sum(x_tail, axis=-1, keepdims=True, dtype=jnp.float32)

    @pl.when(k == num_k - 1)
    def _():
        o_ref[...] = (acc_ref[...] * inv_hw).astype(o_ref.dtype)


def global_avg_pool2d(x, *, block_bytes=8 * 1024 * 1024):
    """Equivalent of F.avg_pool2d(x, kernel_size=x.shape[2:]) for NCHW input."""
    n, c, h, w = x.shape
    rows = n * c
    hw = h * w
    x2d = x.reshape(rows, hw)

    itemsize = jnp.dtype(x.dtype).itemsize
    # Sublane packing multiple: 8 for 4-byte, 16 for 2-byte, 32 for 1-byte dtypes.
    sublane = {4: 8, 2: 16, 1: 32}.get(itemsize, 8)
    hw_lanes = _round_up(hw, 128)  # VMEM footprint of the lane dim (lane-padded)

    # --- Block sizing: aim for ~block_bytes of payload per grid step. ---
    ROW_TILE = min(512, _round_up(rows, sublane))
    max_hw_chunk = max(128, ((block_bytes // (ROW_TILE * itemsize)) // 128) * 128)

    if hw <= max_hw_chunk:
        # Whole spatial extent fits in one chunk: grow ROW_TILE to fill the byte budget
        # (this is the canonical GAP case, e.g. ResNet 7x7 with many N*C rows).
        HW_CHUNK = hw
        rows_budget = max(sublane, ((block_bytes // (hw_lanes * itemsize)) // sublane) * sublane)
        ROW_TILE = min(rows_budget, _round_up(rows, sublane))
    else:
        HW_CHUNK = max_hw_chunk  # multiple of 128 lanes

    # If a single block would cover all rows, make the block exactly the full row extent
    # (a full-dim block is always a legal block shape and avoids an over-run read).
    if ROW_TILE >= rows:
        ROW_TILE = rows

    # v7x megacore: keep >= 2 blocks along the "parallel" row axis when rows allow it,
    # so both TensorCores get work (v5e/v6e single-TC: harmless).
    if pl.cdiv(rows, ROW_TILE) < 2 and rows >= 2 * sublane:
        ROW_TILE = _round_up((rows + 1) // 2, sublane)

    num_row_blocks = pl.cdiv(rows, ROW_TILE)
    num_k = pl.cdiv(hw, HW_CHUNK)
    rem = hw - (num_k - 1) * HW_CHUNK  # valid lanes in the last H*W chunk
    inv_hw = 1.0 / float(hw)

    cost = pl.CostEstimate(
        flops=rows * hw + rows,
        transcendentals=0,
        bytes_accessed=rows * hw * itemsize + rows * itemsize,
    )

    out = pl.pallas_call(
        functools.partial(
            _gap_kernel, inv_hw=inv_hw, num_k=num_k, rem=rem, hw_chunk=HW_CHUNK
        ),
        out_shape=jax.ShapeDtypeStruct((rows, 1), x.dtype),
        grid_spec=pltpu.PrefetchScalarGridSpec(
            num_scalar_prefetch=0,
            grid=(num_row_blocks, num_k),
            in_specs=[pl.BlockSpec((ROW_TILE, HW_CHUNK), lambda i, k: (i, k))],
            out_specs=pl.BlockSpec((ROW_TILE, 1), lambda i, k: (i, 0)),
            scratch_shapes=[pltpu.VMEM((ROW_TILE, 1), jnp.float32)],
        ),
        compiler_params=pltpu.CompilerParams(
            dimension_semantics=("parallel", "arbitrary"),
            # 2 x ~8 MiB double-buffered input blocks must also fit v5e's 16 MiB default
            # scoped limit; 32 MiB is within physical VMEM on v5e/v6e/v7x.
            vmem_limit_bytes=32 * 1024 * 1024,
        ),
        cost_estimate=cost,
    )(x2d)

    return out.reshape(n, c, 1, 1)


if __name__ == "__main__":
    key = jax.random.PRNGKey(0)
    k1, k2, k3 = jax.random.split(key, 3)

    # Case 1: canonical small NCHW input consistent with the module's forward pass.
    x1 = jax.random.normal(k1, (2, 4, 16, 16), dtype=jnp.float32)
    y1 = jax.block_until_ready(global_avg_pool2d(x1))
    ref1 = jnp.mean(x1, axis=(2, 3), keepdims=True)
    assert y1.shape == (2, 4, 1, 1)
    assert jnp.allclose(y1, ref1, atol=1e-5, rtol=1e-5)

    # Case 2: N*C (=15) not a multiple of the sublane pack and odd spatial size (7x7).
    x2 = jax.random.normal(k2, (3, 5, 7, 7), dtype=jnp.float32)
    y2 = jax.block_until_ready(global_avg_pool2d(x2))
    ref2 = jnp.mean(x2, axis=(2, 3), keepdims=True)
    assert y2.shape == (3, 5, 1, 1)
    assert jnp.allclose(y2, ref2, atol=1e-5, rtol=1e-5)

    # Case 3: force the multi-chunk reduction path (accumulator over k + masked H*W tail)
    # with a tiny per-block byte budget, so the tail-mask logic is exercised on small shapes.
    x3 = jax.random.normal(k3, (2, 3, 30, 30), dtype=jnp.float32)  # hw = 900
    y3 = jax.block_until_ready(global_avg_pool2d(x3, block_bytes=8 * 1024))
    ref3 = jnp.mean(x3, axis=(2, 3), keepdims=True)
    assert y3.shape == (2, 3, 1, 1)
    assert jnp.allclose(y3, ref3, atol=1e-5, rtol=1e-5)

    print("KERNEL_OK")
</pallas_src>

<mosaic_0001>
module attributes {stable_mosaic.version = 11 : i64} {
  func.func @_gap_kernel(%arg0: i32, %arg1: i32, %arg2: memref<8x256xf32, #tpu.memory_space<vmem>>, %arg3: memref<8x1xf32, #tpu.memory_space<vmem>>, %arg4: memref<8x1xf32, #tpu.memory_space<vmem>>) attributes {dimension_semantics = [#tpu.dimension_semantics<parallel>, #tpu.dimension_semantics<arbitrary>], iteration_bounds = array<i64: 1, 1>, scalar_prefetch = 0 : i64, scratch_operands = 1 : i64, tpu.core_type = #tpu.core_type<tc>, window_params = [{transform_indices = @transform_0, window_bounds = array<i64: 8, 256>}, {transform_indices = @transform_1, window_bounds = array<i64: 8, 1>}]} {
    %c0_i32 = arith.constant 0 : i32
    %0 = arith.cmpi eq, %arg1, %c0_i32 : i32
    %1 = arith.extui %0 : i1 to i32
    %c0_i32_0 = arith.constant 0 : i32
    %2 = arith.cmpi ne, %1, %c0_i32_0 : i32
    scf.if %2 {
      %cst_8 = arith.constant 0.000000e+00 : f32
      %12 = vector.broadcast %cst_8 : f32 to vector<8x1xf32>
      %c0_9 = arith.constant 0 : index
      %c0_10 = arith.constant 0 : index
      %13 = vector.load %arg4[%c0_9, %c0_10] : memref<8x1xf32, #tpu.memory_space<vmem>>, vector<8x1xf32>
      tpu.vector_store %arg4[%c0_9, %c0_10], %12 {strides = array<i32>} : memref<8x1xf32, #tpu.memory_space<vmem>>, vector<8x1xf32>,
    } else {
    }
    %c0 = arith.constant 0 : index
    %c0_1 = arith.constant 0 : index
    %3 = vector.load %arg4[%c0, %c0_1] : memref<8x1xf32, #tpu.memory_space<vmem>>, vector<8x1xf32>
    %c0_2 = arith.constant 0 : index
    %c0_3 = arith.constant 0 : index
    %4 = vector.load %arg2[%c0_2, %c0_3] : memref<8x256xf32, #tpu.memory_space<vmem>>, vector<8x256xf32>
    %cst = arith.constant dense<0.000000e+00> : vector<8xf32>
    %5 = vector.multi_reduction <add>, %4, %cst [1] : vector<8x256xf32> to vector<8xf32>
    %6 = vector.shape_cast %5 : vector<8xf32> to vector<8x1xf32>
    %7 = arith.addf %3, %6 : vector<8x1xf32>
    %c0_4 = arith.constant 0 : index
    %c0_5 = arith.constant 0 : index
    %8 = vector.load %arg4[%c0_4, %c0_5] : memref<8x1xf32, #tpu.memory_space<vmem>>, vector<8x1xf32>
    tpu.vector_store %arg4[%c0_4, %c0_5], %7 {strides = array<i32>} : memref<8x1xf32, #tpu.memory_space<vmem>>, vector<8x1xf32>,
    %c0_i32_6 = arith.constant 0 : i32
    %9 = arith.cmpi eq, %arg1, %c0_i32_6 : i32
    %10 = arith.extui %9 : i1 to i32
    %c0_i32_7 = arith.constant 0 : i32
    %11 = arith.cmpi ne, %10, %c0_i32_7 : i32
    scf.if %11 {
      %c0_8 = arith.constant 0 : index
      %c0_9 = arith.constant 0 : index
      %12 = vector.load %arg4[%c0_8, %c0_9] : memref<8x1xf32, #tpu.memory_space<vmem>>, vector<8x1xf32>
      %cst_10 = arith.constant 3.906250e-03 : f32
      %13 = vector.broadcast %cst_10 : f32 to vector<8x1xf32>
      %14 = arith.mulf %12, %13 : vector<8x1xf32>
      %c0_11 = arith.constant 0 : index
      %c0_12 = arith.constant 0 : index
      %15 = vector.load %arg3[%c0_11, %c0_12] : memref<8x1xf32, #tpu.memory_space<vmem>>, vector<8x1xf32>
      tpu.vector_store %arg3[%c0_11, %c0_12], %14 {strides = array<i32>} : memref<8x1xf32, #tpu.memory_space<vmem>>, vector<8x1xf32>,
    } else {
    }
    return
  }
  func.func @transform_0(%arg0: i32, %arg1: i32) -> (i32, i32) {
    %c0_i32 = arith.constant 0 : i32
    return %arg0, %arg1 : i32, i32
  }
  func.func @transform_1(%arg0: i32, %arg1: i32) -> (i32, i32) {
    %c0_i32 = arith.constant 0 : i32
    %c0_i32_0 = arith.constant 0 : i32
    return %arg0, %c0_i32 : i32, i32
  }
}

</mosaic_0001>

<llo_original>
// kernel: tpu_custom_call.1
$region0: #{tpu_custom_call.1}
  #allocation0 [shape = 'u32[]', space=smem, size = 0x4, offset = 0x4, fixed_abs, tag = 'smem constant byte address 0x4 - core index']
  #allocation1 [shape = 'u32[144,128]{1,0:T(1,128)}', space=vmem, size = 0x12000, scoped, tag = 'internal scratch']
  #allocation2 [shape = 'f32[8,1]{1,0:T(8,128)}', space=vmem, size = 0x1000, scoped, tag = 'scratch operand']
  %s0 = inlined_call_operand.hbm [shape: f32[8,256], index: 0, kind: input, shape index: {}]
  %s1 = inlined_call_operand.vmem [shape: f32[8,1], index: 1, kind: output, shape index: {}]
  %s2 = sld [smem:[#allocation0]]
  $region26: #{tpu_custom_call.1} parent=0
    _
  %s4 = ssub.s32 1, %s2
  %s5 = scalar_select 0, %s4, %s2
  $region1: #{tpu_custom_call.1} parent=0
    #allocation3 [shape = 'u8[8192]{0}', space=vmem, size = 0x2000, scoped, tag = 'input window, operand 0, single buffered']
    #allocation4 [shape = 's32[1]{0}', space=sflag, size = 0x4, scoped, tag = 'scoped memory for tpu_custom_call.1']
    %6 = vsyncpa [#allocation4], 0
    // Predicated region
    $region2: #{tpu_custom_call.1} parent=1 // pred_check
      _
    $region3: #{tpu_custom_call.1} parent=1 // pred_check_branch
      %8 = sbr.rel (0) target = $region5
    $region4: #{tpu_custom_call.1} parent=1 // pred_region
      %s10 = ssub.s32 256, 256
      %11 = vsyncadd [#allocation4], %s10
      %s13 = sshll.u32 [#allocation3], 4
      %s14 = int_to_ptr.vmem [resolvable:$true] %s13
      %16 = dma.hbm_to_vmem [thread:$0]  %s0, 256, %s14, [#allocation4]
    $region5: #{tpu_custom_call.1} parent=1 // pred_fallthru
      _
    // Predicated region
    $region6: #{tpu_custom_call.1} parent=1 // pred_check
      _
    $region7: #{tpu_custom_call.1} parent=1 // pred_check_branch
      %18 = sbr.rel (0) target = $region9
    $region8: #{tpu_custom_call.1} parent=1 // pred_region
      %19 = dma.done [#allocation4], 256
    $region9: #{tpu_custom_call.1} parent=1 // pred_fallthru
      _
    %p20 = scmp.eq.s32.totalorder 0, 0
    // Predicated region
    $region10: #{tpu_custom_call.1} parent=1 // pred_check
      %p21 = pneg %p20
    $region11: #{tpu_custom_call.1} parent=1 // pred_check_branch
      %23 = sbr.rel (%p21) target = $region13
    $region12: #{tpu_custom_call.1} parent=1 // pred_region
      %vm24 = vcmask 7168
      %25 = vst.msk [vmem:[#allocation2] sm:$0xff] %vm24, 0.0
    $region13: #{tpu_custom_call.1} parent=1 // pred_fallthru
      _
    %v26 = vld [vmem:[#allocation2] sm:$0xff]
    %v27 = vld [vmem:[#allocation3] sm:$0xff]
    %v28 = vld [vmem:[#allocation3 + $0x8] sm:$0xff]
    %v29 = vadd.f32 %v27, %v28
    %30 = vadd.xlane.f32.xlu0 %v29
    %v31 = vpop.xlane.xlu0 %30
    %v32 = vadd.f32 %v26, %v31
    %vm33 = vcmask 7168
    %34 = vst.msk [vmem:[#allocation2] sm:$0xff] %vm33, %v32
    // Predicated region
    $region14: #{tpu_custom_call.1} parent=1 // pred_check
      %p35 = pneg %p20
    $region15: #{tpu_custom_call.1} parent=1 // pred_check_branch
      %37 = sbr.rel (%p35) target = $region17
    $region16: #{tpu_custom_call.1} parent=1 // pred_region
      %v38 = vld [vmem:[#allocation2] sm:$0xff]
      %v39 = vmul.f32 %v38, 0.00390625
      %40 = vst.msk [vmem:[%s1] sm:$0xff] %vm33, %v39
    $region17: #{tpu_custom_call.1} parent=1 // pred_fallthru
      _
    // Predicated region
    $region18: #{tpu_custom_call.1} parent=1 // pred_check
      _
    $region19: #{tpu_custom_call.1} parent=1 // pred_check_branch
      %42 = sbr.rel (0) target = $region21
    $region20: #{tpu_custom_call.1} parent=1 // pred_region
      _
    $region21: #{tpu_custom_call.1} parent=1 // pred_fallthru
      _
    // Predicated region
    $region22: #{tpu_custom_call.1} parent=1 // pred_check
      _
    $region23: #{tpu_custom_call.1} parent=1 // pred_check_branch
      %44 = sbr.rel (0) target = $region25
    $region24: #{tpu_custom_call.1} parent=1 // pred_region
      _
    $region25: #{tpu_custom_call.1} parent=1 // pred_fallthru
      _
    %45 = vsyncpa [#allocation4], 1

</llo_original>
